<compile_context>
chip_gen: v6e
topology: v6e:2x2x1
jax: 0.10.0
libtpu: 0.0.40
codegen_flags: <defaults>
</compile_context>

<pallas_src>
import math

import jax
import jax.numpy as jnp
from jax import lax
from jax.experimental import pallas as pl
from jax.experimental.pallas import tpu as pltpu

_EPS = 1e-5


def _round_up(x, m):
    return ((x + m - 1) // m) * m


def _cdiv(a, b):
    return -(-a // b)


# ----------------------------------------------------------------------------
# Pallas kernel: 5 fused layers per batch tile, weights VMEM-resident,
# bf16 inter-layer activations, f32 MXU accumulation + f32 bias/ReLU.
# ----------------------------------------------------------------------------
def dnn_kernel(x_ref,
               w1_ref, b1_ref, w2_ref, b2_ref, w3_ref, b3_ref, w4_ref, b4_ref,
               w5t_ref, b5_ref, o_ref):
    act_dtype = w1_ref.dtype  # bf16 in production, f32 when testing the fold

    def layer(h, w_ref, b_ref):
        # MXU dot in weight dtype with f32 accumulation; bias + ReLU on the
        # VPU in f32 (v5e has no bf16 VALU); single cast of the result to the
        # activation dtype halves the VMEM round trip to the next layer.
        y = jnp.dot(h, w_ref[...], preferred_element_type=jnp.float32) + b_ref[...]
        return jnp.maximum(y, 0.0).astype(act_dtype)

    h = layer(x_ref[...].astype(act_dtype), w1_ref, b1_ref)   # (TILE_B, 512)
    h = layer(h, w2_ref, b2_ref)                               # (TILE_B, 256)
    h = layer(h, w3_ref, b3_ref)                               # (TILE_B, 128)
    h = layer(h, w4_ref, b4_ref)                               # (TILE_B, 64)

    # fc5 as (1,64) . (TILE_B,64)^T -> (1, TILE_B): lane-dense output slab
    # instead of an N=1 matmul with a (TILE_B,1) masked store.
    o = lax.dot_general(w5t_ref[...], h,
                        dimension_numbers=(((1,), (1,)), ((), ())),
                        preferred_element_type=jnp.float32)
    o_ref[...] = o + b5_ref[...]


# ----------------------------------------------------------------------------
# One-time parameter prep: fold eval-mode BN into next layer, cast weights.
# ----------------------------------------------------------------------------
def prepare_params(raw, weight_dtype=jnp.bfloat16):
    def bn_fold(i):
        s = raw[f"bn{i}_gamma"] * lax.rsqrt(raw[f"bn{i}_var"] + _EPS)
        t = raw[f"bn{i}_beta"] - raw[f"bn{i}_mean"] * s
        return s, t

    s1, t1 = bn_fold(1)
    s2, t2 = bn_fold(2)
    s3, t3 = bn_fold(3)
    s4, t4 = bn_fold(4)

    w1, b1 = raw["w1"], raw["b1"]
    w2, b2 = s1[:, None] * raw["w2"], raw["b2"] + t1 @ raw["w2"]
    w3, b3 = s2[:, None] * raw["w3"], raw["b3"] + t2 @ raw["w3"]
    w4, b4 = s3[:, None] * raw["w4"], raw["b4"] + t3 @ raw["w4"]
    w5, b5 = s4[:, None] * raw["w5"], raw["b5"] + t4 @ raw["w5"]  # (64,1), (1,)

    f32 = jnp.float32
    return (
        w1.astype(weight_dtype), b1[None, :].astype(f32),
        w2.astype(weight_dtype), b2[None, :].astype(f32),
        w3.astype(weight_dtype), b3[None, :].astype(f32),
        w4.astype(weight_dtype), b4[None, :].astype(f32),
        w5.T.astype(weight_dtype), b5.reshape(1, 1).astype(f32),  # (1,64),(1,1)
    )


# ----------------------------------------------------------------------------
# Tiling policy: bounded padding waste + >=2 tiles for moderate/large B so
# the "parallel" batch axis can shard across v7x's two TensorCores.
# ----------------------------------------------------------------------------
def _choose_tiling(B, tile_max=1024):
    n_tiles = max(_cdiv(B, tile_max), 2 if B >= 512 else 1)
    tile = _round_up(_cdiv(B, n_tiles), 8)  # < 8 padded rows per tile
    return tile, n_tiles


# ----------------------------------------------------------------------------
# Forward wrapper (jit this). NOTE: TILE_B depends on B, so distinct batch
# sizes recompile (latency, not correctness, concern).
# ----------------------------------------------------------------------------
def dnn_forward(x, ops):
    B, F = x.shape
    TILE_B, n_tiles = _choose_tiling(B)
    B_pad = TILE_B * n_tiles
    if B_pad != B:
        x = jnp.pad(x, ((0, B_pad - B), (0, 0)))

    def resident(a):  # constant index_map -> stays in VMEM across batch tiles
        return pl.BlockSpec(a.shape, lambda i: (0,) * a.ndim)

    in_specs = ([pl.BlockSpec((TILE_B, F), lambda i: (i, 0))]
                + [resident(a) for a in ops])
    out_specs = pl.BlockSpec((1, TILE_B), lambda i: (0, i))

    flops = 2 * B_pad * (F * 512 + 512 * 256 + 256 * 128 + 128 * 64 + 64 * 1)
    bytes_accessed = (x.size * x.dtype.itemsize
                      + sum(int(a.size) * a.dtype.itemsize for a in ops)
                      + B_pad * 4)

    out = pl.pallas_call(
        dnn_kernel,
        out_shape=jax.ShapeDtypeStruct((1, B_pad), jnp.float32),
        grid=(n_tiles,),
        in_specs=in_specs,
        out_specs=out_specs,
        compiler_params=pltpu.CompilerParams(
            dimension_semantics=("parallel",),
            vmem_limit_bytes=32 * 1024 * 1024),
        cost_estimate=pl.CostEstimate(flops=flops, transcendentals=0,
                                      bytes_accessed=bytes_accessed),
    )(x, *ops)
    return out[0, :B][:, None]   # lane-dense (1, B_pad) -> (B, 1)


# ----------------------------------------------------------------------------
# Deterministic parameter initialization (PyTorch Linear-style uniform bounds).
# ----------------------------------------------------------------------------
def init_params(key, input_size):
    dims = [(input_size, 512), (512, 256), (256, 128), (128, 64), (64, 1)]
    params = {}
    for i, (fan_in, fan_out) in enumerate(dims, start=1):
        key, kw, kb = jax.random.split(key, 3)
        bound = 1.0 / math.sqrt(fan_in)
        # PyTorch stores (out, in); we keep the transposed (in, out) layout.
        params[f"w{i}"] = jax.random.uniform(
            kw, (fan_in, fan_out), jnp.float32, -bound, bound)
        params[f"b{i}"] = jax.random.uniform(
            kb, (fan_out,), jnp.float32, -bound, bound)
    for i, n in zip((1, 2, 3, 4), (512, 256, 128, 64)):
        key, kg, kb2, km, kv = jax.random.split(key, 5)
        params[f"bn{i}_gamma"] = 1.0 + 0.1 * jax.random.normal(kg, (n,), jnp.float32)
        params[f"bn{i}_beta"] = 0.1 * jax.random.normal(kb2, (n,), jnp.float32)
        params[f"bn{i}_mean"] = 0.1 * jax.random.normal(km, (n,), jnp.float32)
        params[f"bn{i}_var"] = 1.0 + 0.1 * jax.random.uniform(kv, (n,), jnp.float32)
    return params


# Pure-JAX references.
def reference_module_f32(x, raw):
    """Exact eval-mode module semantics, full f32 (no fold, no bf16)."""
    h = x
    for i in (1, 2, 3, 4):
        h = jnp.maximum(h @ raw[f"w{i}"] + raw[f"b{i}"], 0.0)
        s = raw[f"bn{i}_gamma"] * lax.rsqrt(raw[f"bn{i}_var"] + _EPS)
        t = raw[f"bn{i}_beta"] - raw[f"bn{i}_mean"] * s
        h = h * s + t
    return h @ raw["w5"] + raw["b5"]


def reference_folded(x, ops):
    """Same math as the kernel (folded weights, same dtypes / bf16 acts)."""
    w1, b1, w2, b2, w3, b3, w4, b4, w5t, b5 = ops
    act_dtype = w1.dtype
    h = x.astype(act_dtype)
    for w, b in ((w1, b1), (w2, b2), (w3, b3), (w4, b4)):
        y = jnp.dot(h, w, preferred_element_type=jnp.float32) + b
        h = jnp.maximum(y, 0.0).astype(act_dtype)
    o = lax.dot_general(w5t, h,
                        dimension_numbers=(((1,), (1,)), ((), ())),
                        preferred_element_type=jnp.float32) + b5
    return o.T  # (B, 1)


if __name__ == "__main__":
    B = 8
    INPUT_SIZE = 32

    key = jax.random.PRNGKey(0)
    key, kx = jax.random.split(key)
    x = jax.random.normal(kx, (B, INPUT_SIZE), jnp.float32)
    raw = init_params(key, INPUT_SIZE)

    # 1) BN-fold algebra is exact: check in f32 against the module semantics.
    ops_f32 = prepare_params(raw, weight_dtype=jnp.float32)
    ref_mod = reference_module_f32(x, raw)
    ref_fold_f32 = reference_folded(x, ops_f32)
    assert jnp.allclose(ref_fold_f32, ref_mod, atol=1e-4, rtol=1e-4), \
        "BN fold mismatch vs module reference"

    # 2) Kernel (bf16 weights + bf16 inter-layer activations, f32 accumulation)
    #    vs identically-quantized pure-JAX reference.
    ops = prepare_params(raw, weight_dtype=jnp.bfloat16)
    forward = jax.jit(dnn_forward)
    out = jax.block_until_ready(forward(x, ops))

    ref = reference_folded(x, ops)
    assert out.shape == (B, 1)
    assert jnp.allclose(out, ref, atol=2e-3, rtol=2e-3), "mismatch vs reference"

    print("KERNEL_OK")
</pallas_src>

<mosaic_0001>
module attributes {stable_mosaic.version = 11 : i64} {
  func.func @dnn_kernel(%arg0: i32, %arg1: memref<8x32xf32, #tpu.memory_space<vmem>>, %arg2: memref<32x512xbf16, #tpu.memory_space<vmem>>, %arg3: memref<1x512xf32, #tpu.memory_space<vmem>>, %arg4: memref<512x256xbf16, #tpu.memory_space<vmem>>, %arg5: memref<1x256xf32, #tpu.memory_space<vmem>>, %arg6: memref<256x128xbf16, #tpu.memory_space<vmem>>, %arg7: memref<1x128xf32, #tpu.memory_space<vmem>>, %arg8: memref<128x64xbf16, #tpu.memory_space<vmem>>, %arg9: memref<1x64xf32, #tpu.memory_space<vmem>>, %arg10: memref<1x64xbf16, #tpu.memory_space<vmem>>, %arg11: memref<1x1xf32, #tpu.memory_space<vmem>>, %arg12: memref<1x8xf32, #tpu.memory_space<vmem>>) attributes {dimension_semantics = [#tpu.dimension_semantics<parallel>], iteration_bounds = array<i64: 1>, scalar_prefetch = 0 : i64, scratch_operands = 0 : i64, tpu.core_type = #tpu.core_type<tc>, window_params = [{transform_indices = @transform_0, window_bounds = array<i64: 8, 32>}, {pipeline_mode = #tpu.pipeline_mode<synchronous>, transform_indices = @transform_1, window_bounds = array<i64: 32, 512>}, {pipeline_mode = #tpu.pipeline_mode<synchronous>, transform_indices = @transform_2, window_bounds = array<i64: 1, 512>}, {pipeline_mode = #tpu.pipeline_mode<synchronous>, transform_indices = @transform_3, window_bounds = array<i64: 512, 256>}, {pipeline_mode = #tpu.pipeline_mode<synchronous>, transform_indices = @transform_4, window_bounds = array<i64: 1, 256>}, {pipeline_mode = #tpu.pipeline_mode<synchronous>, transform_indices = @transform_5, window_bounds = array<i64: 256, 128>}, {pipeline_mode = #tpu.pipeline_mode<synchronous>, transform_indices = @transform_6, window_bounds = array<i64: 1, 128>}, {pipeline_mode = #tpu.pipeline_mode<synchronous>, transform_indices = @transform_7, window_bounds = array<i64: 128, 64>}, {pipeline_mode = #tpu.pipeline_mode<synchronous>, transform_indices = @transform_8, window_bounds = array<i64: 1, 64>}, {pipeline_mode = #tpu.pipeline_mode<synchronous>, transform_indices = @transform_9, window_bounds = array<i64: 1, 64>}, {pipeline_mode = #tpu.pipeline_mode<synchronous>, transform_indices = @transform_10, window_bounds = array<i64: 1, 1>}, {transform_indices = @transform_11, window_bounds = array<i64: 1, 8>}]} {
    %c0 = arith.constant 0 : index
    %c0_0 = arith.constant 0 : index
    %0 = vector.load %arg1[%c0, %c0_0] : memref<8x32xf32, #tpu.memory_space<vmem>>, vector<8x32xf32>
    %1 = arith.truncf %0 : vector<8x32xf32> to vector<8x32xbf16>
    %c0_1 = arith.constant 0 : index
    %c0_2 = arith.constant 0 : index
    %2 = vector.load %arg2[%c0_1, %c0_2] : memref<32x512xbf16, #tpu.memory_space<vmem>>, vector<32x512xbf16>
    %cst = arith.constant dense<0.000000e+00> : vector<8x512xf32>
    %3 = tpu.matmul %1, %2, %cst {dimension_numbers = #tpu.dot_dimension_numbers<[1], [0], [0], [1], [0, 0, 1, 1], [], []>} : vector<8x32xbf16>, vector<32x512xbf16>, vector<8x512xf32> -> vector<8x512xf32>
    %c0_3 = arith.constant 0 : index
    %c0_4 = arith.constant 0 : index
    %4 = vector.load %arg3[%c0_3, %c0_4] : memref<1x512xf32, #tpu.memory_space<vmem>>, vector<1x512xf32>
    %5 = vector.broadcast %4 : vector<1x512xf32> to vector<8x512xf32>
    %6 = arith.addf %3, %5 : vector<8x512xf32>
    %cst_5 = arith.constant 0.000000e+00 : f32
    %7 = vector.broadcast %cst_5 : f32 to vector<8x512xf32>
    %8 = arith.maximumf %6, %7 : vector<8x512xf32>
    %9 = arith.truncf %8 : vector<8x512xf32> to vector<8x512xbf16>
    %c0_6 = arith.constant 0 : index
    %c0_7 = arith.constant 0 : index
    %10 = vector.load %arg4[%c0_6, %c0_7] : memref<512x256xbf16, #tpu.memory_space<vmem>>, vector<512x256xbf16>
    %cst_8 = arith.constant dense<0.000000e+00> : vector<8x256xf32>
    %11 = tpu.matmul %9, %10, %cst_8 {dimension_numbers = #tpu.dot_dimension_numbers<[1], [0], [0], [1], [0, 0, 1, 1], [], []>} : vector<8x512xbf16>, vector<512x256xbf16>, vector<8x256xf32> -> vector<8x256xf32>
    %c0_9 = arith.constant 0 : index
    %c0_10 = arith.constant 0 : index
    %12 = vector.load %arg5[%c0_9, %c0_10] : memref<1x256xf32, #tpu.memory_space<vmem>>, vector<1x256xf32>
    %13 = vector.broadcast %12 : vector<1x256xf32> to vector<8x256xf32>
    %14 = arith.addf %11, %13 : vector<8x256xf32>
    %cst_11 = arith.constant 0.000000e+00 : f32
    %15 = vector.broadcast %cst_11 : f32 to vector<8x256xf32>
    %16 = arith.maximumf %14, %15 : vector<8x256xf32>
    %17 = arith.truncf %16 : vector<8x256xf32> to vector<8x256xbf16>
    %c0_12 = arith.constant 0 : index
    %c0_13 = arith.constant 0 : index
    %18 = vector.load %arg6[%c0_12, %c0_13] : memref<256x128xbf16, #tpu.memory_space<vmem>>, vector<256x128xbf16>
    %cst_14 = arith.constant dense<0.000000e+00> : vector<8x128xf32>
    %19 = tpu.matmul %17, %18, %cst_14 {dimension_numbers = #tpu.dot_dimension_numbers<[1], [0], [0], [1], [0, 0, 1, 1], [], []>} : vector<8x256xbf16>, vector<256x128xbf16>, vector<8x128xf32> -> vector<8x128xf32>
    %c0_15 = arith.constant 0 : index
    %c0_16 = arith.constant 0 : index
    %20 = vector.load %arg7[%c0_15, %c0_16] : memref<1x128xf32, #tpu.memory_space<vmem>>, vector<1x128xf32>
    %21 = vector.broadcast %20 : vector<1x128xf32> to vector<8x128xf32>
    %22 = arith.addf %19, %21 : vector<8x128xf32>
    %cst_17 = arith.constant 0.000000e+00 : f32
    %23 = vector.broadcast %cst_17 : f32 to vector<8x128xf32>
    %24 = arith.maximumf %22, %23 : vector<8x128xf32>
    %25 = arith.truncf %24 : vector<8x128xf32> to vector<8x128xbf16>
    %c0_18 = arith.constant 0 : index
    %c0_19 = arith.constant 0 : index
    %26 = vector.load %arg8[%c0_18, %c0_19] : memref<128x64xbf16, #tpu.memory_space<vmem>>, vector<128x64xbf16>
    %cst_20 = arith.constant dense<0.000000e+00> : vector<8x64xf32>
    %27 = tpu.matmul %25, %26, %cst_20 {dimension_numbers = #tpu.dot_dimension_numbers<[1], [0], [0], [1], [0, 0, 1, 1], [], []>} : vector<8x128xbf16>, vector<128x64xbf16>, vector<8x64xf32> -> vector<8x64xf32>
    %c0_21 = arith.constant 0 : index
    %c0_22 = arith.constant 0 : index
    %28 = vector.load %arg9[%c0_21, %c0_22] : memref<1x64xf32, #tpu.memory_space<vmem>>, vector<1x64xf32>
    %29 = vector.broadcast %28 : vector<1x64xf32> to vector<8x64xf32>
    %30 = arith.addf %27, %29 : vector<8x64xf32>
    %cst_23 = arith.constant 0.000000e+00 : f32
    %31 = vector.broadcast %cst_23 : f32 to vector<8x64xf32>
    %32 = arith.maximumf %30, %31 : vector<8x64xf32>
    %33 = arith.truncf %32 : vector<8x64xf32> to vector<8x64xbf16>
    %c0_24 = arith.constant 0 : index
    %c0_25 = arith.constant 0 : index
    %34 = vector.load %arg10[%c0_24, %c0_25] : memref<1x64xbf16, #tpu.memory_space<vmem>>, vector<1x64xbf16>
    %cst_26 = arith.constant dense<0.000000e+00> : vector<1x8xf32>
    %35 = tpu.matmul %34, %33, %cst_26 {dimension_numbers = #tpu.dot_dimension_numbers<[1], [1], [0], [0], [0, 0, 1, 0], [], []>} : vector<1x64xbf16>, vector<8x64xbf16>, vector<1x8xf32> -> vector<1x8xf32>
    %c0_27 = arith.constant 0 : index
    %c0_28 = arith.constant 0 : index
    %36 = vector.load %arg11[%c0_27, %c0_28] : memref<1x1xf32, #tpu.memory_space<vmem>>, vector<1x1xf32>
    %37 = vector.broadcast %36 : vector<1x1xf32> to vector<1x8xf32>
    %38 = arith.addf %35, %37 : vector<1x8xf32>
    %c0_29 = arith.constant 0 : index
    %c0_30 = arith.constant 0 : index
    %39 = vector.load %arg12[%c0_29, %c0_30] : memref<1x8xf32, #tpu.memory_space<vmem>>, vector<1x8xf32>
    tpu.vector_store %arg12[%c0_29, %c0_30], %38 {strides = array<i32>} : memref<1x8xf32, #tpu.memory_space<vmem>>, vector<1x8xf32>,
    return
  }
  func.func @transform_0(%arg0: i32) -> (i32, i32) {
    %c0_i32 = arith.constant 0 : i32
    %c0_i32_0 = arith.constant 0 : i32
    return %arg0, %c0_i32 : i32, i32
  }
  func.func @transform_1(%arg0: i32) -> (i32, i32) {
    %c0_i32 = arith.constant 0 : i32
    %c0_i32_0 = arith.constant 0 : i32
    %c0_i32_1 = arith.constant 0 : i32
    return %c0_i32, %c0_i32_0 : i32, i32
  }
  func.func @transform_2(%arg0: i32) -> (i32, i32) {
    %c0_i32 = arith.constant 0 : i32
    %c0_i32_0 = arith.constant 0 : i32
    %c0_i32_1 = arith.constant 0 : i32
    return %c0_i32, %c0_i32_0 : i32, i32
  }
  func.func @transform_3(%arg0: i32) -> (i32, i32) {
    %c0_i32 = arith.constant 0 : i32
    %c0_i32_0 = arith.constant 0 : i32
    %c0_i32_1 = arith.constant 0 : i32
    return %c0_i32, %c0_i32_0 : i32, i32
  }
  func.func @transform_4(%arg0: i32) -> (i32, i32) {
    %c0_i32 = arith.constant 0 : i32
    %c0_i32_0 = arith.constant 0 : i32
    %c0_i32_1 = arith.constant 0 : i32
    return %c0_i32, %c0_i32_0 : i32, i32
  }
  func.func @transform_5(%arg0: i32) -> (i32, i32) {
    %c0_i32 = arith.constant 0 : i32
    %c0_i32_0 = arith.constant 0 : i32
    %c0_i32_1 = arith.constant 0 : i32
    return %c0_i32, %c0_i32_0 : i32, i32
  }
  func.func @transform_6(%arg0: i32) -> (i32, i32) {
    %c0_i32 = arith.constant 0 : i32
    %c0_i32_0 = arith.constant 0 : i32
    %c0_i32_1 = arith.constant 0 : i32
    return %c0_i32, %c0_i32_0 : i32, i32
  }
  func.func @transform_7(%arg0: i32) -> (i32, i32) {
    %c0_i32 = arith.constant 0 : i32
    %c0_i32_0 = arith.constant 0 : i32
    %c0_i32_1 = arith.constant 0 : i32
    return %c0_i32, %c0_i32_0 : i32, i32
  }
  func.func @transform_8(%arg0: i32) -> (i32, i32) {
    %c0_i32 = arith.constant 0 : i32
    %c0_i32_0 = arith.constant 0 : i32
    %c0_i32_1 = arith.constant 0 : i32
    return %c0_i32, %c0_i32_0 : i32, i32
  }
  func.func @transform_9(%arg0: i32) -> (i32, i32) {
    %c0_i32 = arith.constant 0 : i32
    %c0_i32_0 = arith.constant 0 : i32
    %c0_i32_1 = arith.constant 0 : i32
    return %c0_i32, %c0_i32_0 : i32, i32
  }
  func.func @transform_10(%arg0: i32) -> (i32, i32) {
    %c0_i32 = arith.constant 0 : i32
    %c0_i32_0 = arith.constant 0 : i32
    %c0_i32_1 = arith.constant 0 : i32
    return %c0_i32, %c0_i32_0 : i32, i32
  }
  func.func @transform_11(%arg0: i32) -> (i32, i32) {
    %c0_i32 = arith.constant 0 : i32
    %c0_i32_0 = arith.constant 0 : i32
    return %c0_i32, %arg0 : i32, i32
  }
}

</mosaic_0001>

<llo_original>
// kernel: dnn_forward.1
$region0: #{dnn_forward.1}
  #allocation0 [shape = 'u32[]', space=smem, size = 0x4, offset = 0x4, fixed_abs, tag = 'smem constant byte address 0x4 - core index']
  #allocation1 [shape = 'u32[144,128]{1,0:T(1,128)}', space=vmem, size = 0x12000, scoped, tag = 'internal scratch']
  #allocation2 [shape = 'f32[1,1]{1,0:T(1,128)S(1)}', space=vmem, size = 0x200, scoped, tag = 'scoped memory for dnn_forward.1']
  %s0 = inlined_call_operand.vmem [shape: f32[8,32], index: 0, kind: input, shape index: {}]
  %s1 = inlined_call_operand.vmem [shape: bf16[32,512], index: 1, kind: input, shape index: {}]
  %s2 = inlined_call_operand.vmem [shape: f32[1,512], index: 2, kind: input, shape index: {}]
  %s3 = inlined_call_operand.hbm [shape: bf16[512,256], index: 3, kind: input, shape index: {}]
  %s4 = inlined_call_operand.vmem [shape: f32[1,256], index: 4, kind: input, shape index: {}]
  %s5 = inlined_call_operand.hbm [shape: bf16[256,128], index: 5, kind: input, shape index: {}]
  %s6 = inlined_call_operand.vmem [shape: f32[1,128], index: 6, kind: input, shape index: {}]
  %s7 = inlined_call_operand.vmem [shape: bf16[128,64], index: 7, kind: input, shape index: {}]
  %s8 = inlined_call_operand.vmem [shape: f32[1,64], index: 8, kind: input, shape index: {}]
  %s9 = inlined_call_operand.vmem [shape: bf16[1,64], index: 9, kind: input, shape index: {}]
  %s10 = inlined_call_operand.<no memory space> [shape: f32[1,1], index: 10, kind: input, shape index: {}]
  %s11 = inlined_call_operand.hbm [shape: f32[1,8], index: 11, kind: output, shape index: {}]
  %s12 = sld [smem:[#allocation0]]
  $region62: #{dnn_forward.1} parent=0
    _
  %s14 = ssub.s32 1, %s12
  %s15 = scalar_select 0, %s14, %s12
  %v16 = vstv %s10
  %17 = vst [vmem:[#allocation2] sm:$0x1] %v16
  $region1: #{dnn_forward.1} parent=0
    #allocation3 [shape = 'u8[262144]{0}', space=vmem, size = 0x40000, scoped, tag = 'input window, operand 3, single buffered']
    #allocation4 [shape = 's32[1]{0}', space=sflag, size = 0x4, scoped, tag = 'scoped memory for dnn_forward.1']
    #allocation5 [shape = 's32[1]{0}', space=sflag, size = 0x4, scoped, tag = 'scoped memory for dnn_forward.1']
    #allocation6 [shape = 'u8[65536]{0}', space=vmem, size = 0x10000, scoped, tag = 'input window, operand 5, single buffered']
    #allocation7 [shape = 's32[1]{0}', space=sflag, size = 0x4, scoped, tag = 'scoped memory for dnn_forward.1']
    #allocation8 [shape = 'u8[512]{0}', space=vmem, size = 0x400, scoped, tag = 'output window, operand 0, single buffered']
    %18 = vsyncpa [#allocation4], 0
    %19 = vsyncpa [#allocation7], 0
    %20 = vsyncpa [#allocation5], 0
    // Predicated region
    $region2: #{dnn_forward.1} parent=1 // pred_check
      _
    $region3: #{dnn_forward.1} parent=1 // pred_check_branch
      %22 = sbr.rel (0) target = $region5
    $region4: #{dnn_forward.1} parent=1 // pred_region
      _
    $region5: #{dnn_forward.1} parent=1 // pred_fallthru
      _
    // Predicated region
    $region6: #{dnn_forward.1} parent=1 // pred_check
      _
    $region7: #{dnn_forward.1} parent=1 // pred_check_branch
      %24 = sbr.rel (0) target = $region9
    $region8: #{dnn_forward.1} parent=1 // pred_region
      _
    $region9: #{dnn_forward.1} parent=1 // pred_fallthru
      _
    // Predicated region
    $region10: #{dnn_forward.1} parent=1 // pred_check
      _
    $region11: #{dnn_forward.1} parent=1 // pred_check_branch
      %26 = sbr.rel (0) target = $region13
    $region12: #{dnn_forward.1} parent=1 // pred_region
      _
    $region13: #{dnn_forward.1} parent=1 // pred_fallthru
      _
    // Predicated region
    $region14: #{dnn_forward.1} parent=1 // pred_check
      _
    $region15: #{dnn_forward.1} parent=1 // pred_check_branch
      %28 = sbr.rel (0) target = $region17
    $region16: #{dnn_forward.1} parent=1 // pred_region
      %s30 = ssub.s32 8192, 8192
      %31 = vsyncadd [#allocation4], %s30
      %s32 = sshll.u32 [#allocation3], 4
      %s33 = int_to_ptr.vmem [resolvable:$true] %s32
      %38 = dma.hbm_to_vmem [thread:$0]  %s3, 8192, %s33, [#allocation4], 128, 128, 8
    $region17: #{dnn_forward.1} parent=1 // pred_fallthru
      _
    // Predicated region
    $region18: #{dnn_forward.1} parent=1 // pred_check
      _
    $region19: #{dnn_forward.1} parent=1 // pred_check_branch
      %40 = sbr.rel (0) target = $region21
    $region20: #{dnn_forward.1} parent=1 // pred_region
      _
    $region21: #{dnn_forward.1} parent=1 // pred_fallthru
      _
    // Predicated region
    $region22: #{dnn_forward.1} parent=1 // pred_check
      _
    $region23: #{dnn_forward.1} parent=1 // pred_check_branch
      %42 = sbr.rel (0) target = $region25
    $region24: #{dnn_forward.1} parent=1 // pred_region
      %s44 = ssub.s32 2048, 2048
      %45 = vsyncadd [#allocation7], %s44
      %s46 = sshll.u32 [#allocation6], 4
      %s47 = int_to_ptr.vmem [resolvable:$true] %s46
      %52 = dma.hbm_to_vmem [thread:$0]  %s5, 2048, %s47, [#allocation7], 64, 64, 4
    $region25: #{dnn_forward.1} parent=1 // pred_fallthru
      _
    // Predicated region
    $region26: #{dnn_forward.1} parent=1 // pred_check
      _
    $region27: #{dnn_forward.1} parent=1 // pred_check_branch
      %54 = sbr.rel (0) target = $region29
    $region28: #{dnn_forward.1} parent=1 // pred_region
      _
    $region29: #{dnn_forward.1} parent=1 // pred_fallthru
      _
    // Predicated region
    $region30: #{dnn_forward.1} parent=1 // pred_check
      _
    $region31: #{dnn_forward.1} parent=1 // pred_check_branch
      %56 = sbr.rel (0) target = $region33
    $region32: #{dnn_forward.1} parent=1 // pred_region
      _
    $region33: #{dnn_forward.1} parent=1 // pred_fallthru
      _
    // Predicated region
    $region34: #{dnn_forward.1} parent=1 // pred_check
      _
    $region35: #{dnn_forward.1} parent=1 // pred_check_branch
      %58 = sbr.rel (0) target = $region37
    $region36: #{dnn_forward.1} parent=1 // pred_region
      _
    $region37: #{dnn_forward.1} parent=1 // pred_fallthru
      _
    // Predicated region
    $region38: #{dnn_forward.1} parent=1 // pred_check
      _
    $region39: #{dnn_forward.1} parent=1 // pred_check_branch
      %60 = sbr.rel (0) target = $region41
    $region40: #{dnn_forward.1} parent=1 // pred_region
      _
    $region41: #{dnn_forward.1} parent=1 // pred_fallthru
      _
    // Predicated region
    $region42: #{dnn_forward.1} parent=1 // pred_check
      _
    $region43: #{dnn_forward.1} parent=1 // pred_check_branch
      %62 = sbr.rel (0) target = $region45
    $region44: #{dnn_forward.1} parent=1 // pred_region
      _
    $region45: #{dnn_forward.1} parent=1 // pred_fallthru
      _
    // Predicated region
    $region46: #{dnn_forward.1} parent=1 // pred_check
      _
    $region47: #{dnn_forward.1} parent=1 // pred_check_branch
      %64 = sbr.rel (0) target = $region49
    $region48: #{dnn_forward.1} parent=1 // pred_region
      %65 = dma.done [#allocation4], 8192
    $region49: #{dnn_forward.1} parent=1 // pred_fallthru
      _
    // Predicated region
    $region50: #{dnn_forward.1} parent=1 // pred_check
      _
    $region51: #{dnn_forward.1} parent=1 // pred_check_branch
      %67 = sbr.rel (0) target = $region53
    $region52: #{dnn_forward.1} parent=1 // pred_region
      %68 = dma.done [#allocation7], 2048
    $region53: #{dnn_forward.1} parent=1 // pred_fallthru
      _
    %v70 = vld [vmem:[%s0] sm:$0xff]
    %v71 = vpack.c.bf16 %v70, %v70
    %v72 = vld [vmem:[%s1] sm:$0xff]
    %v73 = vld [vmem:[%s1 + $0x8] sm:$0xff]
    %v74 = vld [vmem:[%s1 + $0x10] sm:$0xff]
    %v75 = vld [vmem:[%s1 + $0x18] sm:$0xff]
    %v76 = vld [vmem:[%s1 + $0x20] sm:$0xff]
    %v77 = vld [vmem:[%s1 + $0x28] sm:$0xff]
    %v78 = vld [vmem:[%s1 + $0x30] sm:$0xff]
    %v79 = vld [vmem:[%s1 + $0x38] sm:$0xff]
    %v80 = vld [vmem:[%s2] sm:$0xf]
    %v82 = vlaneseq
    %v83 = vshrl.u32 %v82, 7
    %v84 = vsub.s32 0, %v83
    %v85 = vrot.slane %v80, %v84
    %v86 = vlaneseq
    %v87 = vshrl.u32 %v86, 7
    %v88 = vsub.s32 1, %v87
    %v89 = vrot.slane %v80, %v88
    %v90 = vlaneseq
    %v91 = vshrl.u32 %v90, 7
    %v92 = vsub.s32 2, %v91
    %v93 = vrot.slane %v80, %v92
    %v94 = vlaneseq
    %v95 = vshrl.u32 %v94, 7
    %v96 = vsub.s32 3, %v95
    %v97 = vrot.slane %v80, %v96
    %v110 = vunpack.c.l.b16 %v72
    %v111 = vunpack.c.h.b16 %v72
    %v112 = vunpack.c.l.b16 %v73
    %v113 = vunpack.c.h.b16 %v73
    %v114 = vunpack.c.l.b16 %v74
    %v115 = vunpack.c.h.b16 %v74
    %v116 = vunpack.c.l.b16 %v75
    %v117 = vunpack.c.h.b16 %v75
    %v118 = vunpack.c.l.b16 %v76
    %v119 = vunpack.c.h.b16 %v76
    %v120 = vunpack.c.l.b16 %v77
    %v121 = vunpack.c.h.b16 %v77
    %v122 = vunpack.c.l.b16 %v78
    %v123 = vunpack.c.h.b16 %v78
    %v124 = vunpack.c.l.b16 %v79
    %v125 = vunpack.c.h.b16 %v79
    %v126 = vpack.c.b16 %v114, %v110
    %v127 = vpack.c.b16 %v115, %v111
    %v128 = vpack.c.b16 %v116, %v112
    %v129 = vpack.c.b16 %v117, %v113
    %v130 = vpack.c.b16 %v122, %v118
    %v131 = vpack.c.b16 %v123, %v119
    %v132 = vpack.c.b16 %v124, %v120
    %v133 = vpack.c.b16 %v125, %v121
    %vm142 = vcmask 261120
    %v144 = vsel %vm142, %v71, 0
    %146 = vmatprep.subr.bf16.mxu0 0
    %147 = vmatpush1.bf16.msra.mxu0 0
    %148 = vmatprep.subr.bf16.mxu0 0
    %149 = vmatpush1.bf16.msra.mxu0 0
    %150 = vmatprep.subr.bf16.mxu0 0
    %151 = vmatpush1.bf16.msra.mxu0 0
    %152 = vmatprep.subr.bf16.mxu0 0
    %153 = vmatpush1.bf16.msra.mxu0 0
    %154 = vmatprep.subr.bf16.mxu0 0
    %155 = vmatpush1.bf16.msra.mxu0 0
    %156 = vmatprep.subr.bf16.mxu0 0
    %157 = vmatpush1.bf16.msra.mxu0 0
    %158 = vmatprep.subr.bf16.mxu0 %v131
    %159 = vmatpush1.bf16.msra.mxu0 %v130
    %160 = vmatprep.subr.bf16.mxu0 %v127
    %161 = vmatpush1.bf16.msra.mxu0 %v126
    %162 = vmatprep.subr.bf16.mxu0 0
    %163 = vmatpush2.bf16.msra.mxu0 0
    %164 = vmatprep.subr.bf16.mxu0 0
    %165 = vmatpush2.bf16.msra.mxu0 0
    %166 = vmatprep.subr.bf16.mxu0 0
    %167 = vmatpush2.bf16.msra.mxu0 0
    %168 = vmatprep.subr.bf16.mxu0 0
    %169 = vmatpush2.bf16.msra.mxu0 0
    %170 = vmatprep.subr.bf16.mxu0 0
    %171 = vmatpush2.bf16.msra.mxu0 0
    %172 = vmatprep.subr.bf16.mxu0 0
    %173 = vmatpush2.bf16.msra.mxu0 0
    %174 = vmatprep.subr.bf16.mxu0 0
    %175 = vmatpush2.bf16.msra.mxu0 0
    %176 = vmatprep.subr.bf16.mxu0 0
    %177 = vmatpush2.bf16.msra.mxu0 0
    %178 = vmatprep.mubr.bf16.mxu0 0
    %179 = vmatmul.mubr.bf16.gmra.mxu0 %v144
    %v180 = vpop.f32.mrf.mxu0
    %v181 = vadd.f32 %v85, %v180
    %v182 = vpop.f32.mrf.mxu0
    %v183 = vadd.f32 %v89, %v182
    %v184 = vpop.f32.mrf.mxu0
    %v185 = vpop.f32.mrf.mxu0
    %186 = vdwg.mxu0
    %187 = vmatprep.subr.bf16.mxu0 0
    %188 = vmatpush1.bf16.msra.mxu0 0
    %189 = vmatprep.subr.bf16.mxu0 0
    %190 = vmatpush1.bf16.msra.mxu0 0
    %191 = vmatprep.subr.bf16.mxu0 0
    %192 = vmatpush1.bf16.msra.mxu0 0
    %193 = vmatprep.subr.bf16.mxu0 0
    %194 = vmatpush1.bf16.msra.mxu0 0
    %195 = vmatprep.subr.bf16.mxu0 0
    %196 = vmatpush1.bf16.msra.mxu0 0
    %197 = vmatprep.subr.bf16.mxu0 0
    %198 = vmatpush1.bf16.msra.mxu0 0
    %199 = vmatprep.subr.bf16.mxu0 %v133
    %200 = vmatpush1.bf16.msra.mxu0 %v132
    %201 = vmatprep.subr.bf16.mxu0 %v129
    %202 = vmatpush1.bf16.msra.mxu0 %v128
    %203 = vmatprep.subr.bf16.mxu0 0
    %204 = vmatpush2.bf16.msra.mxu0 0
    %205 = vmatprep.subr.bf16.mxu0 0
    %206 = vmatpush2.bf16.msra.mxu0 0
    %207 = vmatprep.subr.bf16.mxu0 0
    %208 = vmatpush2.bf16.msra.mxu0 0
    %209 = vmatprep.subr.bf16.mxu0 0
    %210 = vmatpush2.bf16.msra.mxu0 0
    %211 = vmatprep.subr.bf16.mxu0 0
    %212 = vmatpush2.bf16.msra.mxu0 0
    %213 = vmatprep.subr.bf16.mxu0 0
    %214 = vmatpush2.bf16.msra.mxu0 0
    %215 = vmatprep.subr.bf16.mxu0 0
    %216 = vmatpush2.bf16.msra.mxu0 0
    %217 = vmatprep.subr.bf16.mxu0 0
    %218 = vmatpush2.bf16.msra.mxu0 0
    %219 = vmatprep.mubr.bf16.mxu0 0
    %220 = vmatmul.mubr.bf16.gmra.mxu0 %v144
    %v221 = vpop.f32.mrf.mxu0
    %v222 = vadd.f32 %v93, %v221
    %v223 = vpop.f32.mrf.mxu0
    %v224 = vadd.f32 %v97, %v223
    %v225 = vpop.f32.mrf.mxu0
    %v226 = vpop.f32.mrf.mxu0
    %227 = vdwg.mxu0
    %v228 = vmax.f32 %v181, 0.0
    %v229 = vmax.f32 %v183, 0.0
    %v230 = vmax.f32 %v222, 0.0
    %v231 = vmax.f32 %v224, 0.0
    %v232 = vpack.c.bf16 %v228, %v228
    %v233 = vpack.c.bf16 %v229, %v229
    %v234 = vpack.c.bf16 %v230, %v230
    %v235 = vpack.c.bf16 %v231, %v231
    %v236 = vld [vmem:[#allocation3] sm:$0xff]
    %v237 = vld [vmem:[#allocation3 + $0x8] sm:$0xff]
    %v238 = vld [vmem:[#allocation3 + $0x10] sm:$0xff]
    %v239 = vld [vmem:[#allocation3 + $0x18] sm:$0xff]
    %v240 = vld [vmem:[#allocation3 + $0x20] sm:$0xff]
    %v241 = vld [vmem:[#allocation3 + $0x28] sm:$0xff]
    %v242 = vld [vmem:[#allocation3 + $0x30] sm:$0xff]
    %v243 = vld [vmem:[#allocation3 + $0x38] sm:$0xff]
    %v244 = vld [vmem:[#allocation3 + $0x40] sm:$0xff]
    %v245 = vld [vmem:[#allocation3 + $0x48] sm:$0xff]
    %v246 = vld [vmem:[#allocation3 + $0x50] sm:$0xff]
    %v247 = vld [vmem:[#allocation3 + $0x58] sm:$0xff]
    %v248 = vld [vmem:[#allocation3 + $0x60] sm:$0xff]
    %v249 = vld [vmem:[#allocation3 + $0x68] sm:$0xff]
    %v250 = vld [vmem:[#allocation3 + $0x70] sm:$0xff]
    %v251 = vld [vmem:[#allocation3 + $0x78] sm:$0xff]
    %v252 = vld [vmem:[#allocation3 + $0x80] sm:$0xff]
    %v253 = vld [vmem:[#allocation3 + $0x88] sm:$0xff]
    %v254 = vld [vmem:[#allocation3 + $0x90] sm:$0xff]
    %v255 = vld [vmem:[#allocation3 + $0x98] sm:$0xff]
    %v256 = vld [vmem:[#allocation3 + $0xa0] sm:$0xff]
    %v257 = vld [vmem:[#allocation3 + $0xa8] sm:$0xff]
    %v258 = vld [vmem:[#allocation3 + $0xb0] sm:$0xff]
    %v259 = vld [vmem:[#allocation3 + $0xb8] sm:$0xff]
    %v260 = vld [vmem:[#allocation3 + $0xc0] sm:$0xff]
    %v261 = vld [vmem:[#allocation3 + $0xc8] sm:$0xff]
    %v262 = vld [vmem:[#allocation3 + $0xd0] sm:$0xff]
    %v263 = vld [vmem:[#allocation3 + $0xd8] sm:$0xff]
    %v264 = vld [vmem:[#allocation3 + $0xe0] sm:$0xff]
    %v265 = vld [vmem:[#allocation3 + $0xe8] sm:$0xff]
    %v266 = vld [vmem:[#allocation3 + $0xf0] sm:$0xff]
    %v267 = vld [vmem:[#allocation3 + $0xf8] sm:$0xff]
    %v268 = vld [vmem:[#allocation3 + $0x100] sm:$0xff]
    %v269 = vld [vmem:[#allocation3 + $0x108] sm:$0xff]
    %v270 = vld [vmem:[#allocation3 + $0x110] sm:$0xff]
    %v271 = vld [vmem:[#allocation3 + $0x118] sm:$0xff]
    %v272 = vld [vmem:[#allocation3 + $0x120] sm:$0xff]
    %v273 = vld [vmem:[#allocation3 + $0x128] sm:$0xff]
    %v274 = vld [vmem:[#allocation3 + $0x130] sm:$0xff]
    %v275 = vld [vmem:[#allocation3 + $0x138] sm:$0xff]
    %v276 = vld [vmem:[#allocation3 + $0x140] sm:$0xff]
    %v277 = vld [vmem:[#allocation3 + $0x148] sm:$0xff]
    %v278 = vld [vmem:[#allocation3 + $0x150] sm:$0xff]
    %v279 = vld [vmem:[#allocation3 + $0x158] sm:$0xff]
    %v280 = vld [vmem:[#allocation3 + $0x160] sm:$0xff]
    %v281 = vld [vmem:[#allocation3 + $0x168] sm:$0xff]
    %v282 = vld [vmem:[#allocation3 + $0x170] sm:$0xff]
    %v283 = vld [vmem:[#allocation3 + $0x178] sm:$0xff]
    %v284 = vld [vmem:[#allocation3 + $0x180] sm:$0xff]
    %v285 = vld [vmem:[#allocation3 + $0x188] sm:$0xff]
    %v286 = vld [vmem:[#allocation3 + $0x190] sm:$0xff]
    %v287 = vld [vmem:[#allocation3 + $0x198] sm:$0xff]
    %v288 = vld [vmem:[#allocation3 + $0x1a0] sm:$0xff]
    %v289 = vld [vmem:[#allocation3 + $0x1a8] sm:$0xff]
    %v290 = vld [vmem:[#allocation3 + $0x1b0] sm:$0xff]
    %v291 = vld [vmem:[#allocation3 + $0x1b8] sm:$0xff]
    %v292 = vld [vmem:[#allocation3 + $0x1c0] sm:$0xff]
    %v293 = vld [vmem:[#allocation3 + $0x1c8] sm:$0xff]
    %v294 = vld [vmem:[#allocation3 + $0x1d0] sm:$0xff]
    %v295 = vld [vmem:[#allocation3 + $0x1d8] sm:$0xff]
    %v296 = vld [vmem:[#allocation3 + $0x1e0] sm:$0xff]
    %v297 = vld [vmem:[#allocation3 + $0x1e8] sm:$0xff]
    %v298 = vld [vmem:[#allocation3 + $0x1f0] sm:$0xff]
    %v299 = vld [vmem:[#allocation3 + $0x1f8] sm:$0xff]
    %v300 = vld [vmem:[%s4] sm:$0x3]
    %v302 = vlaneseq
    %v303 = vshrl.u32 %v302, 7
    %v304 = vsub.s32 0, %v303
    %v305 = vrot.slane %v300, %v304
    %v306 = vlaneseq
    %v307 = vshrl.u32 %v306, 7
    %v308 = vsub.s32 1, %v307
    %v309 = vrot.slane %v300, %v308
    %v376 = vunpack.c.l.b16 %v236
    %v377 = vunpack.c.h.b16 %v236
    %v378 = vunpack.c.l.b16 %v237
    %v379 = vunpack.c.h.b16 %v237
    %v380 = vunpack.c.l.b16 %v238
    %v381 = vunpack.c.h.b16 %v238
    %v382 = vunpack.c.l.b16 %v239
    %v383 = vunpack.c.h.b16 %v239
    %v384 = vunpack.c.l.b16 %v240
    %v385 = vunpack.c.h.b16 %v240
    %v386 = vunpack.c.l.b16 %v241
    %v387 = vunpack.c.h.b16 %v241
    %v388 = vunpack.c.l.b16 %v242
    %v389 = vunpack.c.h.b16 %v242
    %v390 = vunpack.c.l.b16 %v243
    %v391 = vunpack.c.h.b16 %v243
    %v392 = vunpack.c.l.b16 %v244
    %v393 = vunpack.c.h.b16 %v244
    %v394 = vunpack.c.l.b16 %v245
    %v395 = vunpack.c.h.b16 %v245
    %v396 = vunpack.c.l.b16 %v246
    %v397 = vunpack.c.h.b16 %v246
    %v398 = vunpack.c.l.b16 %v247
    %v399 = vunpack.c.h.b16 %v247
    %v400 = vunpack.c.l.b16 %v248
    %v401 = vunpack.c.h.b16 %v248
    %v402 = vunpack.c.l.b16 %v249
    %v403 = vunpack.c.h.b16 %v249
    %v404 = vunpack.c.l.b16 %v250
    %v405 = vunpack.c.h.b16 %v250
    %v406 = vunpack.c.l.b16 %v251
    %v407 = vunpack.c.h.b16 %v251
    %v408 = vunpack.c.l.b16 %v252
    %v409 = vunpack.c.h.b16 %v252
    %v410 = vunpack.c.l.b16 %v253
    %v411 = vunpack.c.h.b16 %v253
    %v412 = vunpack.c.l.b16 %v254
    %v413 = vunpack.c.h.b16 %v254
    %v414 = vunpack.c.l.b16 %v255
    %v415 = vunpack.c.h.b16 %v255
    %v416 = vunpack.c.l.b16 %v256
    %v417 = vunpack.c.h.b16 %v256
    %v418 = vunpack.c.l.b16 %v257
    %v419 = vunpack.c.h.b16 %v257
    %v420 = vunpack.c.l.b16 %v258
    %v421 = vunpack.c.h.b16 %v258
    %v422 = vunpack.c.l.b16 %v259
    %v423 = vunpack.c.h.b16 %v259
    %v424 = vunpack.c.l.b16 %v260
    %v425 = vunpack.c.h.b16 %v260
    %v426 = vunpack.c.l.b16 %v261
    %v427 = vunpack.c.h.b16 %v261
    %v428 = vunpack.c.l.b16 %v262
    %v429 = vunpack.c.h.b16 %v262
    %v430 = vunpack.c.l.b16 %v263
    %v431 = vunpack.c.h.b16 %v263
    %v432 = vunpack.c.l.b16 %v264
    %v433 = vunpack.c.h.b16 %v264
    %v434 = vunpack.c.l.b16 %v265
    %v435 = vunpack.c.h.b16 %v265
    %v436 = vunpack.c.l.b16 %v266
    %v437 = vunpack.c.h.b16 %v266
    %v438 = vunpack.c.l.b16 %v267
    %v439 = vunpack.c.h.b16 %v267
    %v440 = vunpack.c.l.b16 %v268
    %v441 = vunpack.c.h.b16 %v268
    %v442 = vunpack.c.l.b16 %v269
    %v443 = vunpack.c.h.b16 %v269
    %v444 = vunpack.c.l.b16 %v270
    %v445 = vunpack.c.h.b16 %v270
    %v446 = vunpack.c.l.b16 %v271
    %v447 = vunpack.c.h.b16 %v271
    %v448 = vunpack.c.l.b16 %v272
    %v449 = vunpack.c.h.b16 %v272
    %v450 = vunpack.c.l.b16 %v273
    %v451 = vunpack.c.h.b16 %v273
    %v452 = vunpack.c.l.b16 %v274
    %v453 = vunpack.c.h.b16 %v274
    %v454 = vunpack.c.l.b16 %v275
    %v455 = vunpack.c.h.b16 %v275
    %v456 = vunpack.c.l.b16 %v276
    %v457 = vunpack.c.h.b16 %v276
    %v458 = vunpack.c.l.b16 %v277
    %v459 = vunpack.c.h.b16 %v277
    %v460 = vunpack.c.l.b16 %v278
    %v461 = vunpack.c.h.b16 %v278
    %v462 = vunpack.c.l.b16 %v279
    %v463 = vunpack.c.h.b16 %v279
    %v464 = vunpack.c.l.b16 %v280
    %v465 = vunpack.c.h.b16 %v280
    %v466 = vunpack.c.l.b16 %v281
    %v467 = vunpack.c.h.b16 %v281
    %v468 = vunpack.c.l.b16 %v282
    %v469 = vunpack.c.h.b16 %v282
    %v470 = vunpack.c.l.b16 %v283
    %v471 = vunpack.c.h.b16 %v283
    %v472 = vunpack.c.l.b16 %v284
    %v473 = vunpack.c.h.b16 %v284
    %v474 = vunpack.c.l.b16 %v285
    %v475 = vunpack.c.h.b16 %v285
    %v476 = vunpack.c.l.b16 %v286
    %v477 = vunpack.c.h.b16 %v286
    %v478 = vunpack.c.l.b16 %v287
    %v479 = vunpack.c.h.b16 %v287
    %v480 = vunpack.c.l.b16 %v288
    %v481 = vunpack.c.h.b16 %v288
    %v482 = vunpack.c.l.b16 %v289
    %v483 = vunpack.c.h.b16 %v289
    %v484 = vunpack.c.l.b16 %v290
    %v485 = vunpack.c.h.b16 %v290
    %v486 = vunpack.c.l.b16 %v291
    %v487 = vunpack.c.h.b16 %v291
    %v488 = vunpack.c.l.b16 %v292
    %v489 = vunpack.c.h.b16 %v292
    %v490 = vunpack.c.l.b16 %v293
    %v491 = vunpack.c.h.b16 %v293
    %v492 = vunpack.c.l.b16 %v294
    %v493 = vunpack.c.h.b16 %v294
    %v494 = vunpack.c.l.b16 %v295
    %v495 = vunpack.c.h.b16 %v295
    %v496 = vunpack.c.l.b16 %v296
    %v497 = vunpack.c.h.b16 %v296
    %v498 = vunpack.c.l.b16 %v297
    %v499 = vunpack.c.h.b16 %v297
    %v500 = vunpack.c.l.b16 %v298
    %v501 = vunpack.c.h.b16 %v298
    %v502 = vunpack.c.l.b16 %v299
    %v503 = vunpack.c.h.b16 %v299
    %v504 = vpack.c.b16 %v378, %v376
    %v505 = vpack.c.b16 %v379, %v377
    %v506 = vpack.c.b16 %v382, %v380
    %v507 = vpack.c.b16 %v383, %v381
    %v508 = vpack.c.b16 %v386, %v384
    %v509 = vpack.c.b16 %v387, %v385
    %v510 = vpack.c.b16 %v390, %v388
    %v511 = vpack.c.b16 %v391, %v389
    %v512 = vpack.c.b16 %v394, %v392
    %v513 = vpack.c.b16 %v395, %v393
    %v514 = vpack.c.b16 %v398, %v396
    %v515 = vpack.c.b16 %v399, %v397
    %v516 = vpack.c.b16 %v402, %v400
    %v517 = vpack.c.b16 %v403, %v401
    %v518 = vpack.c.b16 %v406, %v404
    %v519 = vpack.c.b16 %v407, %v405
    %v520 = vpack.c.b16 %v410, %v408
    %v521 = vpack.c.b16 %v411, %v409
    %v522 = vpack.c.b16 %v414, %v412
    %v523 = vpack.c.b16 %v415, %v413
    %v524 = vpack.c.b16 %v418, %v416
    %v525 = vpack.c.b16 %v419, %v417
    %v526 = vpack.c.b16 %v422, %v420
    %v527 = vpack.c.b16 %v423, %v421
    %v528 = vpack.c.b16 %v426, %v424
    %v529 = vpack.c.b16 %v427, %v425
    %v530 = vpack.c.b16 %v430, %v428
    %v531 = vpack.c.b16 %v431, %v429
    %v532 = vpack.c.b16 %v434, %v432
    %v533 = vpack.c.b16 %v435, %v433
    %v534 = vpack.c.b16 %v438, %v436
    %v535 = vpack.c.b16 %v439, %v437
    %v536 = vpack.c.b16 %v442, %v440
    %v537 = vpack.c.b16 %v443, %v441
    %v538 = vpack.c.b16 %v446, %v444
    %v539 = vpack.c.b16 %v447, %v445
    %v540 = vpack.c.b16 %v450, %v448
    %v541 = vpack.c.b16 %v451, %v449
    %v542 = vpack.c.b16 %v454, %v452
    %v543 = vpack.c.b16 %v455, %v453
    %v544 = vpack.c.b16 %v458, %v456
    %v545 = vpack.c.b16 %v459, %v457
    %v546 = vpack.c.b16 %v462, %v460
    %v547 = vpack.c.b16 %v463, %v461
    %v548 = vpack.c.b16 %v466, %v464
    %v549 = vpack.c.b16 %v467, %v465
    %v550 = vpack.c.b16 %v470, %v468
    %v551 = vpack.c.b16 %v471, %v469
    %v552 = vpack.c.b16 %v474, %v472
    %v553 = vpack.c.b16 %v475, %v473
    %v554 = vpack.c.b16 %v478, %v476
    %v555 = vpack.c.b16 %v479, %v477
    %v556 = vpack.c.b16 %v482, %v480
    %v557 = vpack.c.b16 %v483, %v481
    %v558 = vpack.c.b16 %v486, %v484
    %v559 = vpack.c.b16 %v487, %v485
    %v560 = vpack.c.b16 %v490, %v488
    %v561 = vpack.c.b16 %v491, %v489
    %v562 = vpack.c.b16 %v494, %v492
    %v563 = vpack.c.b16 %v495, %v493
    %v564 = vpack.c.b16 %v498, %v496
    %v565 = vpack.c.b16 %v499, %v497
    %v566 = vpack.c.b16 %v502, %v500
    %v567 = vpack.c.b16 %v503, %v501
    %632 = vmatprep.subr.bf16.mxu0 %v519
    %633 = vmatpush1.bf16.msra.mxu0 %v518
    %634 = vmatprep.subr.bf16.mxu0 %v517
    %635 = vmatpush1.bf16.msra.mxu0 %v516
    %636 = vmatprep.subr.bf16.mxu0 %v515
    %637 = vmatpush1.bf16.msra.mxu0 %v514
    %638 = vmatprep.subr.bf16.mxu0 %v513
    %639 = vmatpush1.bf16.msra.mxu0 %v512
    %640 = vmatprep.subr.bf16.mxu0 %v511
    %641 = vmatpush1.bf16.msra.mxu0 %v510
    %642 = vmatprep.subr.bf16.mxu0 %v509
    %643 = vmatpush1.bf16.msra.mxu0 %v508
    %644 = vmatprep.subr.bf16.mxu0 %v507
    %645 = vmatpush1.bf16.msra.mxu0 %v506
    %646 = vmatprep.subr.bf16.mxu0 %v505
    %647 = vmatpush1.bf16.msra.mxu0 %v504
    %648 = vmatprep.subr.bf16.mxu0 %v535
    %649 = vmatpush2.bf16.msra.mxu0 %v534
    %650 = vmatprep.subr.bf16.mxu0 %v533
    %651 = vmatpush2.bf16.msra.mxu0 %v532
    %652 = vmatprep.subr.bf16.mxu0 %v531
    %653 = vmatpush2.bf16.msra.mxu0 %v530
    %654 = vmatprep.subr.bf16.mxu0 %v529
    %655 = vmatpush2.bf16.msra.mxu0 %v528
    %656 = vmatprep.subr.bf16.mxu0 %v527
    %657 = vmatpush2.bf16.msra.mxu0 %v526
    %658 = vmatprep.subr.bf16.mxu0 %v525
    %659 = vmatpush2.bf16.msra.mxu0 %v524
    %660 = vmatprep.subr.bf16.mxu0 %v523
    %661 = vmatpush2.bf16.msra.mxu0 %v522
    %662 = vmatprep.subr.bf16.mxu0 %v521
    %663 = vmatpush2.bf16.msra.mxu0 %v520
    %664 = vmatprep.mubr.bf16.mxu0 %v233
    %665 = vmatmul.mubr.bf16.gmra.mxu0 %v232
    %v666 = vpop.f32.mrf.mxu0
    %v667 = vadd.f32 %v305, %v666
    %v668 = vpop.f32.mrf.mxu0
    %v669 = vadd.f32 %v309, %v668
    %v670 = vpop.f32.mrf.mxu0
    %v671 = vpop.f32.mrf.mxu0
    %672 = vdwg.mxu0
    %673 = vmatprep.subr.bf16.mxu0 %v551
    %674 = vmatpush1.bf16.msra.mxu0 %v550
    %675 = vmatprep.subr.bf16.mxu0 %v549
    %676 = vmatpush1.bf16.msra.mxu0 %v548
    %677 = vmatprep.subr.bf16.mxu0 %v547
    %678 = vmatpush1.bf16.msra.mxu0 %v546
    %679 = vmatprep.subr.bf16.mxu0 %v545
    %680 = vmatpush1.bf16.msra.mxu0 %v544
    %681 = vmatprep.subr.bf16.mxu0 %v543
    %682 = vmatpush1.bf16.msra.mxu0 %v542
    %683 = vmatprep.subr.bf16.mxu0 %v541
    %684 = vmatpush1.bf16.msra.mxu0 %v540
    %685 = vmatprep.subr.bf16.mxu0 %v539
    %686 = vmatpush1.bf16.msra.mxu0 %v538
    %687 = vmatprep.subr.bf16.mxu0 %v537
    %688 = vmatpush1.bf16.msra.mxu0 %v536
    %689 = vmatprep.subr.bf16.mxu0 %v567
    %690 = vmatpush2.bf16.msra.mxu0 %v566
    %691 = vmatprep.subr.bf16.mxu0 %v565
    %692 = vmatpush2.bf16.msra.mxu0 %v564
    %693 = vmatprep.subr.bf16.mxu0 %v563
    %694 = vmatpush2.bf16.msra.mxu0 %v562
    %695 = vmatprep.subr.bf16.mxu0 %v561
    %696 = vmatpush2.bf16.msra.mxu0 %v560
    %697 = vmatprep.subr.bf16.mxu0 %v559
    %698 = vmatpush2.bf16.msra.mxu0 %v558
    %699 = vmatprep.subr.bf16.mxu0 %v557
    %700 = vmatpush2.bf16.msra.mxu0 %v556
    %701 = vmatprep.subr.bf16.mxu0 %v555
    %702 = vmatpush2.bf16.msra.mxu0 %v554
    %703 = vmatprep.subr.bf16.mxu0 %v553
    %704 = vmatpush2.bf16.msra.mxu0 %v552
    %705 = vmatprep.mubr.bf16.mxu0 %v235
    %706 = vmatmul.mubr.bf16.gmra.mxu0 %v234
    %v707 = vpop.f32.mrf.mxu0
    %v708 = vadd.f32 %v667, %v707
    %v709 = vpop.f32.mrf.mxu0
    %v710 = vadd.f32 %v669, %v709
    %v711 = vpop.f32.mrf.mxu0
    %v712 = vpop.f32.mrf.mxu0
    %713 = vdwg.mxu0
    %v714 = vmax.f32 %v708, 0.0
    %v715 = vmax.f32 %v710, 0.0
    %v716 = vpack.c.bf16 %v714, %v714
    %v717 = vpack.c.bf16 %v715, %v715
    %v718 = vld [vmem:[#allocation6] sm:$0xf]
    %v719 = vld [vmem:[#allocation6 + $0x4] sm:$0xf]
    %v720 = vld [vmem:[#allocation6 + $0x8] sm:$0xf]
    %v721 = vld [vmem:[#allocation6 + $0xc] sm:$0xf]
    %v722 = vld [vmem:[#allocation6 + $0x10] sm:$0xf]
    %v723 = vld [vmem:[#allocation6 + $0x14] sm:$0xf]
    %v724 = vld [vmem:[#allocation6 + $0x18] sm:$0xf]
    %v725 = vld [vmem:[#allocation6 + $0x1c] sm:$0xf]
    %v726 = vld [vmem:[#allocation6 + $0x20] sm:$0xf]
    %v727 = vld [vmem:[#allocation6 + $0x24] sm:$0xf]
    %v728 = vld [vmem:[#allocation6 + $0x28] sm:$0xf]
    %v729 = vld [vmem:[#allocation6 + $0x2c] sm:$0xf]
    %v730 = vld [vmem:[#allocation6 + $0x30] sm:$0xf]
    %v731 = vld [vmem:[#allocation6 + $0x34] sm:$0xf]
    %v732 = vld [vmem:[#allocation6 + $0x38] sm:$0xf]
    %v733 = vld [vmem:[#allocation6 + $0x3c] sm:$0xf]
    %v734 = vld [vmem:[#allocation6 + $0x40] sm:$0xf]
    %v735 = vld [vmem:[#allocation6 + $0x44] sm:$0xf]
    %v736 = vld [vmem:[#allocation6 + $0x48] sm:$0xf]
    %v737 = vld [vmem:[#allocation6 + $0x4c] sm:$0xf]
    %v738 = vld [vmem:[#allocation6 + $0x50] sm:$0xf]
    %v739 = vld [vmem:[#allocation6 + $0x54] sm:$0xf]
    %v740 = vld [vmem:[#allocation6 + $0x58] sm:$0xf]
    %v741 = vld [vmem:[#allocation6 + $0x5c] sm:$0xf]
    %v742 = vld [vmem:[#allocation6 + $0x60] sm:$0xf]
    %v743 = vld [vmem:[#allocation6 + $0x64] sm:$0xf]
    %v744 = vld [vmem:[#allocation6 + $0x68] sm:$0xf]
    %v745 = vld [vmem:[#allocation6 + $0x6c] sm:$0xf]
    %v746 = vld [vmem:[#allocation6 + $0x70] sm:$0xf]
    %v747 = vld [vmem:[#allocation6 + $0x74] sm:$0xf]
    %v748 = vld [vmem:[#allocation6 + $0x78] sm:$0xf]
    %v749 = vld [vmem:[#allocation6 + $0x7c] sm:$0xf]
    %v750 = vld [vmem:[%s6] sm:$0x1]
    %v752 = vlaneseq
    %v753 = vshrl.u32 %v752, 7
    %v754 = vsub.s32 0, %v753
    %v755 = vrot.slane %v750, %v754
    %v789 = vunpack.c.l.b16 %v718
    %v790 = vunpack.c.l.b16 %v719
    %v791 = vunpack.c.l.b16 %v720
    %v792 = vunpack.c.l.b16 %v721
    %v793 = vunpack.c.l.b16 %v722
    %v794 = vunpack.c.l.b16 %v723
    %v795 = vunpack.c.l.b16 %v724
    %v796 = vunpack.c.l.b16 %v725
    %v797 = vunpack.c.l.b16 %v726
    %v798 = vunpack.c.l.b16 %v727
    %v799 = vunpack.c.l.b16 %v728
    %v800 = vunpack.c.l.b16 %v729
    %v801 = vunpack.c.l.b16 %v730
    %v802 = vunpack.c.l.b16 %v731
    %v803 = vunpack.c.l.b16 %v732
    %v804 = vunpack.c.l.b16 %v733
    %v805 = vunpack.c.l.b16 %v734
    %v806 = vunpack.c.l.b16 %v735
    %v807 = vunpack.c.l.b16 %v736
    %v808 = vunpack.c.l.b16 %v737
    %v809 = vunpack.c.l.b16 %v738
    %v810 = vunpack.c.l.b16 %v739
    %v811 = vunpack.c.l.b16 %v740
    %v812 = vunpack.c.l.b16 %v741
    %v813 = vunpack.c.l.b16 %v742
    %v814 = vunpack.c.l.b16 %v743
    %v815 = vunpack.c.l.b16 %v744
    %v816 = vunpack.c.l.b16 %v745
    %v817 = vunpack.c.l.b16 %v746
    %v818 = vunpack.c.l.b16 %v747
    %v819 = vunpack.c.l.b16 %v748
    %v820 = vunpack.c.l.b16 %v749
    %v821 = vpack.c.b16 %v790, %v789
    %v822 = vpack.c.b16 %v792, %v791
    %v823 = vpack.c.b16 %v794, %v793
    %v824 = vpack.c.b16 %v796, %v795
    %v825 = vpack.c.b16 %v798, %v797
    %v826 = vpack.c.b16 %v800, %v799
    %v827 = vpack.c.b16 %v802, %v801
    %v828 = vpack.c.b16 %v804, %v803
    %v829 = vpack.c.b16 %v806, %v805
    %v830 = vpack.c.b16 %v808, %v807
    %v831 = vpack.c.b16 %v810, %v809
    %v832 = vpack.c.b16 %v812, %v811
    %v833 = vpack.c.b16 %v814, %v813
    %v834 = vpack.c.b16 %v816, %v815
    %v835 = vpack.c.b16 %v818, %v817
    %v836 = vpack.c.b16 %v820, %v819
    %853 = vmatprep.subr.bf16.mxu0 0
    %854 = vmatpush1.bf16.msra.mxu0 %v828
    %855 = vmatprep.subr.bf16.mxu0 0
    %856 = vmatpush1.bf16.msra.mxu0 %v827
    %857 = vmatprep.subr.bf16.mxu0 0
    %858 = vmatpush1.bf16.msra.mxu0 %v826
    %859 = vmatprep.subr.bf16.mxu0 0
    %860 = vmatpush1.bf16.msra.mxu0 %v825
    %861 = vmatprep.subr.bf16.mxu0 0
    %862 = vmatpush1.bf16.msra.mxu0 %v824
    %863 = vmatprep.subr.bf16.mxu0 0
    %864 = vmatpush1.bf16.msra.mxu0 %v823
    %865 = vmatprep.subr.bf16.mxu0 0
    %866 = vmatpush1.bf16.msra.mxu0 %v822
    %867 = vmatprep.subr.bf16.mxu0 0
    %868 = vmatpush1.bf16.msra.mxu0 %v821
    %869 = vmatprep.subr.bf16.mxu0 0
    %870 = vmatpush2.bf16.msra.mxu0 %v836
    %871 = vmatprep.subr.bf16.mxu0 0
    %872 = vmatpush2.bf16.msra.mxu0 %v835
    %873 = vmatprep.subr.bf16.mxu0 0
    %874 = vmatpush2.bf16.msra.mxu0 %v834
    %875 = vmatprep.subr.bf16.mxu0 0
    %876 = vmatpush2.bf16.msra.mxu0 %v833
    %877 = vmatprep.subr.bf16.mxu0 0
    %878 = vmatpush2.bf16.msra.mxu0 %v832
    %879 = vmatprep.subr.bf16.mxu0 0
    %880 = vmatpush2.bf16.msra.mxu0 %v831
    %881 = vmatprep.subr.bf16.mxu0 0
    %882 = vmatpush2.bf16.msra.mxu0 %v830
    %883 = vmatprep.subr.bf16.mxu0 0
    %884 = vmatpush2.bf16.msra.mxu0 %v829
    %885 = vmatprep.mubr.bf16.mxu0 %v717
    %886 = vmatmul.mubr.bf16.gmra.mxu0 %v716
    %v887 = vpop.f32.mrf.mxu0
    %v888 = vadd.f32 %v755, %v887
    %v889 = vpop.f32.mrf.mxu0
    %v890 = vpop.f32.mrf.mxu0
    %v891 = vpop.f32.mrf.mxu0
    %892 = vdwg.mxu0
    %v893 = vmax.f32 %v888, 0.0
    %v894 = vpack.c.bf16 %v893, %v893
    %v895 = vld [vmem:[%s7] sm:$0xf]
    %v896 = vld [vmem:[%s7 + $0x4] sm:$0xf]
    %v897 = vld [vmem:[%s7 + $0x8] sm:$0xf]
    %v898 = vld [vmem:[%s7 + $0xc] sm:$0xf]
    %v899 = vld [vmem:[%s7 + $0x10] sm:$0xf]
    %v900 = vld [vmem:[%s7 + $0x14] sm:$0xf]
    %v901 = vld [vmem:[%s7 + $0x18] sm:$0xf]
    %v902 = vld [vmem:[%s7 + $0x1c] sm:$0xf]
    %v903 = vld [vmem:[%s7 + $0x20] sm:$0xf]
    %v904 = vld [vmem:[%s7 + $0x24] sm:$0xf]
    %v905 = vld [vmem:[%s7 + $0x28] sm:$0xf]
    %v906 = vld [vmem:[%s7 + $0x2c] sm:$0xf]
    %v907 = vld [vmem:[%s7 + $0x30] sm:$0xf]
    %v908 = vld [vmem:[%s7 + $0x34] sm:$0xf]
    %v909 = vld [vmem:[%s7 + $0x38] sm:$0xf]
    %v910 = vld [vmem:[%s7 + $0x3c] sm:$0xf]
    %v911 = vld [vmem:[%s8] sm:$0x1]
    %v913 = vlaneseq
    %v914 = vshrl.u32 %v913, 7
    %v915 = vsub.s32 0, %v914
    %v916 = vrot.slane %v911, %v915
    %v934 = vunpack.c.l.b16 %v895
    %v935 = vunpack.c.l.b16 %v896
    %v936 = vunpack.c.l.b16 %v897
    %v937 = vunpack.c.l.b16 %v898
    %v938 = vunpack.c.l.b16 %v899
    %v939 = vunpack.c.l.b16 %v900
    %v940 = vunpack.c.l.b16 %v901
    %v941 = vunpack.c.l.b16 %v902
    %v942 = vunpack.c.l.b16 %v903
    %v943 = vunpack.c.l.b16 %v904
    %v944 = vunpack.c.l.b16 %v905
    %v945 = vunpack.c.l.b16 %v906
    %v946 = vunpack.c.l.b16 %v907
    %v947 = vunpack.c.l.b16 %v908
    %v948 = vunpack.c.l.b16 %v909
    %v949 = vunpack.c.l.b16 %v910
    %v950 = vpack.c.b16 %v935, %v934
    %v951 = vpack.c.b16 %v937, %v936
    %v952 = vpack.c.b16 %v939, %v938
    %v953 = vpack.c.b16 %v941, %v940
    %v954 = vpack.c.b16 %v943, %v942
    %v955 = vpack.c.b16 %v945, %v944
    %v956 = vpack.c.b16 %v947, %v946
    %v957 = vpack.c.b16 %v949, %v948
    %966 = vmatprep.subr.bf16.mxu0 0
    %967 = vmatpush1.bf16.msra.mxu0 %v957
    %968 = vmatprep.subr.bf16.mxu0 0
    %969 = vmatpush1.bf16.msra.mxu0 %v956
    %970 = vmatprep.subr.bf16.mxu0 0
    %971 = vmatpush1.bf16.msra.mxu0 %v955
    %972 = vmatprep.subr.bf16.mxu0 0
    %973 = vmatpush1.bf16.msra.mxu0 %v954
    %974 = vmatprep.subr.bf16.mxu0 0
    %975 = vmatpush1.bf16.msra.mxu0 %v953
    %976 = vmatprep.subr.bf16.mxu0 0
    %977 = vmatpush1.bf16.msra.mxu0 %v952
    %978 = vmatprep.subr.bf16.mxu0 0
    %979 = vmatpush1.bf16.msra.mxu0 %v951
    %980 = vmatprep.subr.bf16.mxu0 0
    %981 = vmatpush1.bf16.msra.mxu0 %v950
    %982 = vmatprep.subr.bf16.mxu0 0
    %983 = vmatpush2.bf16.msra.mxu0 0
    %984 = vmatprep.subr.bf16.mxu0 0
    %985 = vmatpush2.bf16.msra.mxu0 0
    %986 = vmatprep.subr.bf16.mxu0 0
    %987 = vmatpush2.bf16.msra.mxu0 0
    %988 = vmatprep.subr.bf16.mxu0 0
    %989 = vmatpush2.bf16.msra.mxu0 0
    %990 = vmatprep.subr.bf16.mxu0 0
    %991 = vmatpush2.bf16.msra.mxu0 0
    %992 = vmatprep.subr.bf16.mxu0 0
    %993 = vmatpush2.bf16.msra.mxu0 0
    %994 = vmatprep.subr.bf16.mxu0 0
    %995 = vmatpush2.bf16.msra.mxu0 0
    %996 = vmatprep.subr.bf16.mxu0 0
    %997 = vmatpush2.bf16.msra.mxu0 0
    %998 = vmatprep.mubr.bf16.mxu0 0
    %999 = vmatmul.mubr.bf16.gmra.mxu0 %v894
    %v1000 = vpop.f32.mrf.mxu0
    %v1001 = vadd.f32 %v916, %v1000
    %v1002 = vpop.f32.mrf.mxu0
    %v1003 = vpop.f32.mrf.mxu0
    %v1004 = vpop.f32.mrf.mxu0
    %1005 = vdwg.mxu0
    %v1006 = vmax.f32 %v1001, 0.0
    %v1007 = vpack.c.bf16 %v1006, %v1006
    %v1008 = vld [vmem:[%s9] sm:$0x1]
    %v1009 = vld [vmem:[#allocation2] sm:$0x1]
    %1011 = vset.pattern.permute.xlu0 0
    %1012 = vperm.xlu0 %1011, %v1009
    %v1013 = vpop.permute.xlu0 %1012
    %v1015 = vlaneseq
    %v1016 = vshrl.u32 %v1015, 7
    %v1017 = vsub.s32 0, %v1016
    %v1018 = vrot.slane %v1013, %v1017
    %vm1019 = vcmask 523264
    %v1021 = vsel %vm1019, %v1008, 0
    %v1024 = vsel %vm1019, %v1007, 0
    %1026 = vmatprep.subr.bf16.mxu0 0
    %1027 = vmatpush1.bf16.xpose.msra.mxu0 0
    %1028 = vmatprep.subr.bf16.mxu0 0
    %1029 = vmatpush1.bf16.xpose.msra.mxu0 0
    %1030 = vmatprep.subr.bf16.mxu0 0
    %1031 = vmatpush1.bf16.xpose.msra.mxu0 0
    %1032 = vmatprep.subr.bf16.mxu0 0
    %1033 = vmatpush1.bf16.xpose.msra.mxu0 0
    %1034 = vmatprep.subr.bf16.mxu0 0
    %1035 = vmatpush1.bf16.xpose.msra.mxu0 0
    %1036 = vmatprep.subr.bf16.mxu0 0
    %1037 = vmatpush1.bf16.xpose.msra.mxu0 0
    %1038 = vmatprep.subr.bf16.mxu0 0
    %1039 = vmatpush1.bf16.xpose.msra.mxu0 0
    %1040 = vmatprep.subr.bf16.mxu0 0
    %1041 = vmatpush1.bf16.xpose.msra.mxu0 %v1024
    %1042 = vmatprep.subr.bf16.mxu0 0
    %1043 = vmatpush2.bf16.xpose.msra.mxu0 0
    %1044 = vmatprep.subr.bf16.mxu0 0
    %1045 = vmatpush2.bf16.xpose.msra.mxu0 0
    %1046 = vmatprep.subr.bf16.mxu0 0
    %1047 = vmatpush2.bf16.xpose.msra.mxu0 0
    %1048 = vmatprep.subr.bf16.mxu0 0
    %1049 = vmatpush2.bf16.xpose.msra.mxu0 0
    %1050 = vmatprep.subr.bf16.mxu0 0
    %1051 = vmatpush2.bf16.xpose.msra.mxu0 0
    %1052 = vmatprep.subr.bf16.mxu0 0
    %1053 = vmatpush2.bf16.xpose.msra.mxu0 0
    %1054 = vmatprep.subr.bf16.mxu0 0
    %1055 = vmatpush2.bf16.xpose.msra.mxu0 0
    %1056 = vmatprep.subr.bf16.mxu0 0
    %1057 = vmatpush2.bf16.xpose.msra.mxu0 0
    %1058 = vmatprep.mubr.bf16.mxu0 0
    %1059 = vmatmul.mubr.bf16.gmra.mxu0 %v1021
    %v1060 = vpop.f32.mrf.mxu0
    %v1061 = vadd.f32 %v1018, %v1060
    %v1062 = vpop.f32.mrf.mxu0
    %v1063 = vpop.f32.mrf.mxu0
    %v1064 = vpop.f32.mrf.mxu0
    %1065 = vdwg.mxu0
    %vm1066 = vcmask 57344
    %1067 = vst.msk [vmem:[#allocation8] sm:$0x1] %vm1066, %v1061
    // Predicated region
    $region54: #{dnn_forward.1} parent=1 // pred_check
      _
    $region55: #{dnn_forward.1} parent=1 // pred_check_branch
      %1069 = sbr.rel (0) target = $region57
    $region56: #{dnn_forward.1} parent=1 // pred_region
      %s1071 = ssub.s32 16, 16
      %1072 = vsyncadd [#allocation5], %s1071
      %s1074 = sshll.u32 [#allocation8], 4
      %s1075 = int_to_ptr.vmem [resolvable:$true] %s1074
      %1077 = dma.vmem_to_hbm [thread:$0]  %s1075, 16, %s11, [#allocation5]
    $region57: #{dnn_forward.1} parent=1 // pred_fallthru
      _
    // Predicated region
    $region58: #{dnn_forward.1} parent=1 // pred_check
      _
    $region59: #{dnn_forward.1} parent=1 // pred_check_branch
      %1079 = sbr.rel (0) target = $region61
    $region60: #{dnn_forward.1} parent=1 // pred_region
      %1080 = dma.done [#allocation5], 16
    $region61: #{dnn_forward.1} parent=1 // pred_fallthru
      _
    %1081 = vsyncpa [#allocation4], 1
    %1082 = vsyncpa [#allocation7], 1
    %1083 = vsyncpa [#allocation5], 1

</llo_original>
